<compile_context>
chip_gen: v5e
topology: v5e:2x2
jax: 0.10.0
libtpu: 0.0.40
codegen_flags: <defaults>
</compile_context>

<pallas_src>
import jax
import jax.numpy as jnp
from jax.experimental import pallas as pl
from jax.experimental.pallas import tpu as pltpu


def _round_up(x: int, m: int) -> int:
    return (x + m - 1) // m * m


def _inverse_dynamics_kernel(x_ref, w1_ref, b1_ref, w2_ref, b2_ref, out_ref):
    # fc1: (TB, 2D) @ (2D, H), f32 accumulate; bias + ReLU in f32.
    h = jnp.dot(x_ref[...], w1_ref[...], preferred_element_type=jnp.float32)
    h = jnp.maximum(h + b1_ref[...], 0.0)
    # fc2: (TB, H) @ (H, A_pad), f32 accumulate; lane-dense output store.
    out = jnp.dot(h.astype(w2_ref.dtype), w2_ref[...],
                  preferred_element_type=jnp.float32)
    out_ref[...] = (out + b2_ref[...]).astype(out_ref.dtype)


def cartpole_inverse_dynamics(xt, xt_1, w1, b1, w2, b2, *,
                              matmul_dtype=jnp.float32,
                              batch_tile=512):
    """Pallas forward pass.

    Args:
      xt, xt_1: (B, D) float32 observations.
      w1: (2*D, H) float32  -- fc1 weight, pre-transposed (torch stores (H, 2D)).
      b1: (H,)    float32
      w2: (H, A)  float32   -- fc2 weight, pre-transposed.
      b2: (A,)    float32
      matmul_dtype: dtype for MXU inputs (f32 default; bf16 recommended on
        v6e/v7x at large batch — accumulation stays f32 either way).
      batch_tile: max rows per grid step.
    Returns:
      (B, A) float32 logits.
    """
    B, D = xt.shape
    H = w1.shape[1]
    A = w2.shape[1]

    # Fuse the concat once in the wrapper (single K=2D matmul in the kernel).
    x = jnp.concatenate([xt, xt_1], axis=-1)          # (B, 2D)

    # Lane-dense output: pad A up to a multiple of 128 (unmasked stores).
    A_pad = _round_up(A, 128)
    w2p = jnp.pad(w2, ((0, 0), (0, A_pad - A)))
    b2p = jnp.pad(b2, (0, A_pad - A)).reshape(1, A_pad)
    b1_2d = b1.reshape(1, H)

    # Batch grid: TB rows per step, weights resident across the whole grid.
    TB = min(batch_tile, _round_up(B, 8))
    B_pad = _round_up(B, TB)
    if B_pad != B:
        x = jnp.pad(x, ((0, B_pad - B), (0, 0)))

    # Optional reduced-precision MXU inputs; biases stay f32.
    x = x.astype(matmul_dtype)
    w1m = w1.astype(matmul_dtype)
    w2m = w2p.astype(matmul_dtype)

    out = pl.pallas_call(
        _inverse_dynamics_kernel,
        out_shape=jax.ShapeDtypeStruct((B_pad, A_pad), jnp.float32),
        grid=(B_pad // TB,),
        in_specs=[
            pl.BlockSpec((TB, 2 * D), lambda i: (i, 0)),   # x, tiled over batch
            pl.BlockSpec((2 * D, H), lambda i: (0, 0)),    # w1, resident
            pl.BlockSpec((1, H), lambda i: (0, 0)),        # b1, resident
            pl.BlockSpec((H, A_pad), lambda i: (0, 0)),    # w2, resident
            pl.BlockSpec((1, A_pad), lambda i: (0, 0)),    # b2, resident
        ],
        out_specs=pl.BlockSpec((TB, A_pad), lambda i: (i, 0)),
        compiler_params=pltpu.CompilerParams(
            dimension_semantics=("parallel",)),
    )(x, w1m, b1_2d, w2m, b2p)

    return out[:B, :A]


def _ref_forward(xt, xt_1, w1, b1, w2, b2):
    x = jnp.concatenate([xt, xt_1], axis=-1)
    h = jnp.maximum(x @ w1 + b1, 0.0)
    return h @ w2 + b2


if __name__ == "__main__":
    # CartPole: observation dim 4, 2 actions.
    input_shape = 4
    num_actions = 2
    hidden = 512

    key = jax.random.PRNGKey(0)
    k_xt, k_xt1, k_w1, k_b1, k_w2, k_b2 = jax.random.split(key, 6)

    # Deterministic init mimicking nn.Linear's uniform(-1/sqrt(fan_in), ...)
    bound1 = 1.0 / jnp.sqrt(2.0 * input_shape)
    w1 = jax.random.uniform(k_w1, (2 * input_shape, hidden),
                            minval=-bound1, maxval=bound1, dtype=jnp.float32)
    b1 = jax.random.uniform(k_b1, (hidden,),
                            minval=-bound1, maxval=bound1, dtype=jnp.float32)
    bound2 = 1.0 / jnp.sqrt(float(hidden))
    w2 = jax.random.uniform(k_w2, (hidden, num_actions),
                            minval=-bound2, maxval=bound2, dtype=jnp.float32)
    b2 = jax.random.uniform(k_b2, (num_actions,),
                            minval=-bound2, maxval=bound2, dtype=jnp.float32)

    # --- Test 1: small batch (B=8), f32, single grid step -------------------
    B1 = 8
    xt = jax.random.normal(k_xt, (B1, input_shape), dtype=jnp.float32)
    xt_1 = jax.random.normal(k_xt1, (B1, input_shape), dtype=jnp.float32)

    out = cartpole_inverse_dynamics(xt, xt_1, w1, b1, w2, b2)
    jax.block_until_ready(out)
    ref = _ref_forward(xt, xt_1, w1, b1, w2, b2)
    assert out.shape == (B1, num_actions)
    assert jnp.allclose(out, ref, atol=1e-4, rtol=1e-4), "f32 small-batch mismatch"

    # --- Test 2: larger batch (B=600), f32, multi-step batch grid + padding --
    B2 = 600
    k2a, k2b = jax.random.split(jax.random.PRNGKey(1))
    xt2 = jax.random.normal(k2a, (B2, input_shape), dtype=jnp.float32)
    xt2_1 = jax.random.normal(k2b, (B2, input_shape), dtype=jnp.float32)

    out2 = cartpole_inverse_dynamics(xt2, xt2_1, w1, b1, w2, b2)
    jax.block_until_ready(out2)
    ref2 = _ref_forward(xt2, xt2_1, w1, b1, w2, b2)
    assert out2.shape == (B2, num_actions)
    assert jnp.allclose(out2, ref2, atol=1e-4, rtol=1e-4), "f32 large-batch mismatch"

    # --- Test 3: bf16 MXU inputs (v6e/v7x path), f32 accumulate --------------
    out3 = cartpole_inverse_dynamics(xt2, xt2_1, w1, b1, w2, b2,
                                     matmul_dtype=jnp.bfloat16)
    jax.block_until_ready(out3)
    assert out3.shape == (B2, num_actions)
    assert jnp.allclose(out3, ref2, atol=5e-2, rtol=5e-2), "bf16 path mismatch"

    print("KERNEL_OK")
</pallas_src>

<mosaic_0001>
module attributes {stable_mosaic.version = 11 : i64} {
  func.func @_inverse_dynamics_kernel(%arg0: i32, %arg1: memref<8x8xf32, #tpu.memory_space<vmem>>, %arg2: memref<8x512xf32, #tpu.memory_space<vmem>>, %arg3: memref<1x512xf32, #tpu.memory_space<vmem>>, %arg4: memref<512x128xf32, #tpu.memory_space<vmem>>, %arg5: memref<1x128xf32, #tpu.memory_space<vmem>>, %arg6: memref<8x128xf32, #tpu.memory_space<vmem>>) attributes {dimension_semantics = [#tpu.dimension_semantics<parallel>], iteration_bounds = array<i64: 1>, scalar_prefetch = 0 : i64, scratch_operands = 0 : i64, tpu.core_type = #tpu.core_type<tc>, window_params = [{transform_indices = @transform_0, window_bounds = array<i64: 8, 8>}, {pipeline_mode = #tpu.pipeline_mode<synchronous>, transform_indices = @transform_1, window_bounds = array<i64: 8, 512>}, {pipeline_mode = #tpu.pipeline_mode<synchronous>, transform_indices = @transform_2, window_bounds = array<i64: 1, 512>}, {pipeline_mode = #tpu.pipeline_mode<synchronous>, transform_indices = @transform_3, window_bounds = array<i64: 512, 128>}, {pipeline_mode = #tpu.pipeline_mode<synchronous>, transform_indices = @transform_4, window_bounds = array<i64: 1, 128>}, {transform_indices = @transform_5, window_bounds = array<i64: 8, 128>}]} {
    %c0 = arith.constant 0 : index
    %c0_0 = arith.constant 0 : index
    %0 = vector.load %arg1[%c0, %c0_0] : memref<8x8xf32, #tpu.memory_space<vmem>>, vector<8x8xf32>
    %c0_1 = arith.constant 0 : index
    %c0_2 = arith.constant 0 : index
    %1 = vector.load %arg2[%c0_1, %c0_2] : memref<8x512xf32, #tpu.memory_space<vmem>>, vector<8x512xf32>
    %cst = arith.constant dense<0.000000e+00> : vector<8x512xf32>
    %2 = tpu.matmul %0, %1, %cst {dimension_numbers = #tpu.dot_dimension_numbers<[1], [0], [0], [1], [0, 0, 1, 1], [], []>} : vector<8x8xf32>, vector<8x512xf32>, vector<8x512xf32> -> vector<8x512xf32>
    %c0_3 = arith.constant 0 : index
    %c0_4 = arith.constant 0 : index
    %3 = vector.load %arg3[%c0_3, %c0_4] : memref<1x512xf32, #tpu.memory_space<vmem>>, vector<1x512xf32>
    %4 = vector.broadcast %3 : vector<1x512xf32> to vector<8x512xf32>
    %5 = arith.addf %2, %4 : vector<8x512xf32>
    %cst_5 = arith.constant 0.000000e+00 : f32
    %6 = vector.broadcast %cst_5 : f32 to vector<8x512xf32>
    %7 = arith.maximumf %5, %6 : vector<8x512xf32>
    %c0_6 = arith.constant 0 : index
    %c0_7 = arith.constant 0 : index
    %8 = vector.load %arg4[%c0_6, %c0_7] : memref<512x128xf32, #tpu.memory_space<vmem>>, vector<512x128xf32>
    %cst_8 = arith.constant dense<0.000000e+00> : vector<8x128xf32>
    %9 = tpu.matmul %7, %8, %cst_8 {dimension_numbers = #tpu.dot_dimension_numbers<[1], [0], [0], [1], [0, 0, 1, 1], [], []>} : vector<8x512xf32>, vector<512x128xf32>, vector<8x128xf32> -> vector<8x128xf32>
    %c0_9 = arith.constant 0 : index
    %c0_10 = arith.constant 0 : index
    %10 = vector.load %arg5[%c0_9, %c0_10] : memref<1x128xf32, #tpu.memory_space<vmem>>, vector<1x128xf32>
    %11 = vector.broadcast %10 : vector<1x128xf32> to vector<8x128xf32>
    %12 = arith.addf %9, %11 : vector<8x128xf32>
    %c0_11 = arith.constant 0 : index
    %c0_12 = arith.constant 0 : index
    %13 = vector.load %arg6[%c0_11, %c0_12] : memref<8x128xf32, #tpu.memory_space<vmem>>, vector<8x128xf32>
    tpu.vector_store %arg6[%c0_11, %c0_12], %12 {strides = array<i32>} : memref<8x128xf32, #tpu.memory_space<vmem>>, vector<8x128xf32>,
    return
  }
  func.func @transform_0(%arg0: i32) -> (i32, i32) {
    %c0_i32 = arith.constant 0 : i32
    %c0_i32_0 = arith.constant 0 : i32
    return %arg0, %c0_i32 : i32, i32
  }
  func.func @transform_1(%arg0: i32) -> (i32, i32) {
    %c0_i32 = arith.constant 0 : i32
    %c0_i32_0 = arith.constant 0 : i32
    %c0_i32_1 = arith.constant 0 : i32
    return %c0_i32, %c0_i32_0 : i32, i32
  }
  func.func @transform_2(%arg0: i32) -> (i32, i32) {
    %c0_i32 = arith.constant 0 : i32
    %c0_i32_0 = arith.constant 0 : i32
    %c0_i32_1 = arith.constant 0 : i32
    return %c0_i32, %c0_i32_0 : i32, i32
  }
  func.func @transform_3(%arg0: i32) -> (i32, i32) {
    %c0_i32 = arith.constant 0 : i32
    %c0_i32_0 = arith.constant 0 : i32
    %c0_i32_1 = arith.constant 0 : i32
    return %c0_i32, %c0_i32_0 : i32, i32
  }
  func.func @transform_4(%arg0: i32) -> (i32, i32) {
    %c0_i32 = arith.constant 0 : i32
    %c0_i32_0 = arith.constant 0 : i32
    %c0_i32_1 = arith.constant 0 : i32
    return %c0_i32, %c0_i32_0 : i32, i32
  }
  func.func @transform_5(%arg0: i32) -> (i32, i32) {
    %c0_i32 = arith.constant 0 : i32
    %c0_i32_0 = arith.constant 0 : i32
    return %arg0, %c0_i32 : i32, i32
  }
}

</mosaic_0001>

<llo_original>
// kernel: tpu_custom_call.1
$region0: #{tpu_custom_call.1}
  #allocation0 [shape = 'u32[]', space=smem, size = 0x4, offset = 0x4, fixed_abs, tag = 'smem constant byte address 0x4 - core index']
  #allocation1 [shape = 'u32[72,128]{1,0:T(1,128)}', space=vmem, size = 0x9000, scoped, tag = 'internal scratch']
  %s0 = inlined_call_operand.hbm [shape: f32[8,8], index: 0, kind: input, shape index: {}]
  %s1 = inlined_call_operand.hbm [shape: f32[8,512], index: 1, kind: input, shape index: {}]
  %s2 = inlined_call_operand.hbm [shape: f32[1,512], index: 2, kind: input, shape index: {}]
  %s3 = inlined_call_operand.hbm [shape: f32[512,128], index: 3, kind: input, shape index: {}]
  %s4 = inlined_call_operand.vmem [shape: f32[1,128], index: 4, kind: input, shape index: {}]
  %s5 = inlined_call_operand.hbm [shape: f32[8,128], index: 5, kind: output, shape index: {}]
  %s6 = sld [smem:[#allocation0]]
  $region46: #{tpu_custom_call.1} parent=0
    _
  %s8 = ssub.s32 1, %s6
  %s9 = scalar_select 0, %s8, %s6
  $region1: #{tpu_custom_call.1} parent=0
    #allocation2 [shape = 'u8[4096]{0}', space=vmem, size = 0x1000, scoped, tag = 'input window, operand 0, single buffered']
    #allocation3 [shape = 's32[1]{0}', space=sflag, size = 0x4, scoped, tag = 'scoped memory for tpu_custom_call.1']
    #allocation4 [shape = 's32[1]{0}', space=sflag, size = 0x4, scoped, tag = 'scoped memory for tpu_custom_call.1']
    #allocation5 [shape = 'u8[16384]{0}', space=vmem, size = 0x4000, scoped, tag = 'input window, operand 1, single buffered']
    #allocation6 [shape = 's32[1]{0}', space=sflag, size = 0x4, scoped, tag = 'scoped memory for tpu_custom_call.1']
    #allocation7 [shape = 'u8[2048]{0}', space=vmem, size = 0x800, scoped, tag = 'input window, operand 2, single buffered']
    #allocation8 [shape = 'u8[262144]{0}', space=vmem, size = 0x40000, scoped, tag = 'input window, operand 3, single buffered']
    #allocation9 [shape = 's32[1]{0}', space=sflag, size = 0x4, scoped, tag = 'scoped memory for tpu_custom_call.1']
    #allocation10 [shape = 'u8[4096]{0}', space=vmem, size = 0x1000, scoped, tag = 'output window, operand 0, single buffered']
    %10 = vsyncpa [#allocation3], 0
    %11 = vsyncpa [#allocation6], 0
    %12 = vsyncpa [#allocation9], 0
    %13 = vsyncpa [#allocation4], 0
    // Predicated region
    $region2: #{tpu_custom_call.1} parent=1 // pred_check
      _
    $region3: #{tpu_custom_call.1} parent=1 // pred_check_branch
      %15 = sbr.rel (0) target = $region5
    $region4: #{tpu_custom_call.1} parent=1 // pred_region
      %17 = vsyncadd [#allocation3], 0
      %s19 = sshll.u32 %s0, 4
      %s20 = int_to_ptr.hbm [resolvable:$true] %s19
      %s21 = sshll.u32 [#allocation2], 4
      %s22 = int_to_ptr.vmem [resolvable:$true] %s21
      %24 = dma.hbm_to_vmem [thread:$0]  %s20, 128, %s22, [#allocation3]
    $region5: #{tpu_custom_call.1} parent=1 // pred_fallthru
      _
    // Predicated region
    $region6: #{tpu_custom_call.1} parent=1 // pred_check
      _
    $region7: #{tpu_custom_call.1} parent=1 // pred_check_branch
      %26 = sbr.rel (0) target = $region9
    $region8: #{tpu_custom_call.1} parent=1 // pred_region
      %28 = vsyncadd [#allocation6], 0
      %s30 = sshll.u32 %s1, 4
      %s31 = int_to_ptr.hbm [resolvable:$true] %s30
      %s32 = sshll.u32 [#allocation5], 4
      %s33 = int_to_ptr.vmem [resolvable:$true] %s32
      %35 = dma.hbm_to_vmem [thread:$0]  %s31, 512, %s33, [#allocation6]
    $region9: #{tpu_custom_call.1} parent=1 // pred_fallthru
      _
    // Predicated region
    $region10: #{tpu_custom_call.1} parent=1 // pred_check
      _
    $region11: #{tpu_custom_call.1} parent=1 // pred_check_branch
      %37 = sbr.rel (0) target = $region13
    $region12: #{tpu_custom_call.1} parent=1 // pred_region
      %39 = vsyncadd [#allocation6], 0
      %s41 = sshll.u32 %s2, 4
      %s42 = int_to_ptr.hbm [resolvable:$true] %s41
      %s43 = sshll.u32 [#allocation7], 4
      %s44 = int_to_ptr.vmem [resolvable:$true] %s43
      %46 = dma.hbm_to_vmem [thread:$0]  %s42, 64, %s44, [#allocation6]
    $region13: #{tpu_custom_call.1} parent=1 // pred_fallthru
      _
    // Predicated region
    $region14: #{tpu_custom_call.1} parent=1 // pred_check
      _
    $region15: #{tpu_custom_call.1} parent=1 // pred_check_branch
      %48 = sbr.rel (0) target = $region17
    $region16: #{tpu_custom_call.1} parent=1 // pred_region
      %50 = vsyncadd [#allocation9], 0
      %s51 = sshll.u32 %s3, 4
      %s52 = int_to_ptr.hbm [resolvable:$true] %s51
      %s53 = sshll.u32 [#allocation8], 4
      %s54 = int_to_ptr.vmem [resolvable:$true] %s53
      %59 = dma.hbm_to_vmem [thread:$0]  %s52, 8192, %s54, [#allocation9], 128, 128, 8
    $region17: #{tpu_custom_call.1} parent=1 // pred_fallthru
      _
    // Predicated region
    $region18: #{tpu_custom_call.1} parent=1 // pred_check
      _
    $region19: #{tpu_custom_call.1} parent=1 // pred_check_branch
      %61 = sbr.rel (0) target = $region21
    $region20: #{tpu_custom_call.1} parent=1 // pred_region
      _
    $region21: #{tpu_custom_call.1} parent=1 // pred_fallthru
      _
    // Predicated region
    $region22: #{tpu_custom_call.1} parent=1 // pred_check
      _
    $region23: #{tpu_custom_call.1} parent=1 // pred_check_branch
      %63 = sbr.rel (0) target = $region25
    $region24: #{tpu_custom_call.1} parent=1 // pred_region
      %65 = dma.done [#allocation3], 128
    $region25: #{tpu_custom_call.1} parent=1 // pred_fallthru
      _
    // Predicated region
    $region26: #{tpu_custom_call.1} parent=1 // pred_check
      _
    $region27: #{tpu_custom_call.1} parent=1 // pred_check_branch
      %67 = sbr.rel (0) target = $region29
    $region28: #{tpu_custom_call.1} parent=1 // pred_region
      %69 = dma.done [#allocation6], 512
    $region29: #{tpu_custom_call.1} parent=1 // pred_fallthru
      _
    // Predicated region
    $region30: #{tpu_custom_call.1} parent=1 // pred_check
      _
    $region31: #{tpu_custom_call.1} parent=1 // pred_check_branch
      %71 = sbr.rel (0) target = $region33
    $region32: #{tpu_custom_call.1} parent=1 // pred_region
      %73 = dma.done [#allocation6], 64
    $region33: #{tpu_custom_call.1} parent=1 // pred_fallthru
      _
    // Predicated region
    $region34: #{tpu_custom_call.1} parent=1 // pred_check
      _
    $region35: #{tpu_custom_call.1} parent=1 // pred_check_branch
      %75 = sbr.rel (0) target = $region37
    $region36: #{tpu_custom_call.1} parent=1 // pred_region
      %77 = dma.done [#allocation9], 8192
    $region37: #{tpu_custom_call.1} parent=1 // pred_fallthru
      _
    %v78 = vld [vmem:[#allocation2] sm:$0xff]
    %v79 = vld [vmem:[#allocation5] sm:$0xff]
    %v80 = vld [vmem:[#allocation5 + $0x8] sm:$0xff]
    %v81 = vld [vmem:[#allocation5 + $0x10] sm:$0xff]
    %v82 = vld [vmem:[#allocation5 + $0x18] sm:$0xff]
    %v83 = vld [vmem:[#allocation7] sm:$0xf]
    %v85 = vperm.slane %v83, 0
    %v86 = vperm.slane %v83, 1
    %v87 = vperm.slane %v83, 2
    %v88 = vperm.slane %v83, 3
    %vm93 = vcmask 64512
    %v95 = vsel %vm93, %v78, 0
    %97 = vmatpush.msra.mxu0 0.0
    %98 = vmatpush.msra.mxu0 0.0
    %99 = vmatpush.msra.mxu0 0.0
    %100 = vmatpush.msra.mxu0 0.0
    %101 = vmatpush.msra.mxu0 0.0
    %102 = vmatpush.msra.mxu0 0.0
    %103 = vmatpush.msra.mxu0 0.0
    %104 = vmatpush.msra.mxu0 0.0
    %105 = vmatpush.msra.mxu0 0.0
    %106 = vmatpush.msra.mxu0 0.0
    %107 = vmatpush.msra.mxu0 0.0
    %108 = vmatpush.msra.mxu0 0.0
    %109 = vmatpush.msra.mxu0 0.0
    %110 = vmatpush.msra.mxu0 0.0
    %111 = vmatpush.msra.mxu0 0.0
    %112 = vmatpush.msra.mxu0 %v79
    %113 = vmatmul.f32.gmra.mxu0 %v95
    %v114 = vpop.f32.mrf.mxu0
    %v115 = vadd.f32 %v85, %v114
    %116 = vdwg.mxu0
    %117 = vmatpush.msra.mxu0 0.0
    %118 = vmatpush.msra.mxu0 0.0
    %119 = vmatpush.msra.mxu0 0.0
    %120 = vmatpush.msra.mxu0 0.0
    %121 = vmatpush.msra.mxu0 0.0
    %122 = vmatpush.msra.mxu0 0.0
    %123 = vmatpush.msra.mxu0 0.0
    %124 = vmatpush.msra.mxu0 0.0
    %125 = vmatpush.msra.mxu0 0.0
    %126 = vmatpush.msra.mxu0 0.0
    %127 = vmatpush.msra.mxu0 0.0
    %128 = vmatpush.msra.mxu0 0.0
    %129 = vmatpush.msra.mxu0 0.0
    %130 = vmatpush.msra.mxu0 0.0
    %131 = vmatpush.msra.mxu0 0.0
    %132 = vmatpush.msra.mxu0 %v80
    %133 = vmatmul.f32.gmra.mxu0 %v95
    %v134 = vpop.f32.mrf.mxu0
    %v135 = vadd.f32 %v86, %v134
    %136 = vdwg.mxu0
    %137 = vmatpush.msra.mxu0 0.0
    %138 = vmatpush.msra.mxu0 0.0
    %139 = vmatpush.msra.mxu0 0.0
    %140 = vmatpush.msra.mxu0 0.0
    %141 = vmatpush.msra.mxu0 0.0
    %142 = vmatpush.msra.mxu0 0.0
    %143 = vmatpush.msra.mxu0 0.0
    %144 = vmatpush.msra.mxu0 0.0
    %145 = vmatpush.msra.mxu0 0.0
    %146 = vmatpush.msra.mxu0 0.0
    %147 = vmatpush.msra.mxu0 0.0
    %148 = vmatpush.msra.mxu0 0.0
    %149 = vmatpush.msra.mxu0 0.0
    %150 = vmatpush.msra.mxu0 0.0
    %151 = vmatpush.msra.mxu0 0.0
    %152 = vmatpush.msra.mxu0 %v81
    %153 = vmatmul.f32.gmra.mxu0 %v95
    %v154 = vpop.f32.mrf.mxu0
    %v155 = vadd.f32 %v87, %v154
    %156 = vdwg.mxu0
    %157 = vmatpush.msra.mxu0 0.0
    %158 = vmatpush.msra.mxu0 0.0
    %159 = vmatpush.msra.mxu0 0.0
    %160 = vmatpush.msra.mxu0 0.0
    %161 = vmatpush.msra.mxu0 0.0
    %162 = vmatpush.msra.mxu0 0.0
    %163 = vmatpush.msra.mxu0 0.0
    %164 = vmatpush.msra.mxu0 0.0
    %165 = vmatpush.msra.mxu0 0.0
    %166 = vmatpush.msra.mxu0 0.0
    %167 = vmatpush.msra.mxu0 0.0
    %168 = vmatpush.msra.mxu0 0.0
    %169 = vmatpush.msra.mxu0 0.0
    %170 = vmatpush.msra.mxu0 0.0
    %171 = vmatpush.msra.mxu0 0.0
    %172 = vmatpush.msra.mxu0 %v82
    %173 = vmatmul.f32.gmra.mxu0 %v95
    %v174 = vpop.f32.mrf.mxu0
    %v175 = vadd.f32 %v88, %v174
    %176 = vdwg.mxu0
    %v177 = vmax.f32 %v115, 0.0
    %v178 = vmax.f32 %v135, 0.0
    %v179 = vmax.f32 %v155, 0.0
    %v180 = vmax.f32 %v175, 0.0
    %v181 = vld [vmem:[#allocation8] sm:$0xff]
    %v182 = vld [vmem:[#allocation8 + $0x8] sm:$0xff]
    %v183 = vld [vmem:[#allocation8 + $0x10] sm:$0xff]
    %v184 = vld [vmem:[#allocation8 + $0x18] sm:$0xff]
    %v185 = vld [vmem:[#allocation8 + $0x20] sm:$0xff]
    %v186 = vld [vmem:[#allocation8 + $0x28] sm:$0xff]
    %v187 = vld [vmem:[#allocation8 + $0x30] sm:$0xff]
    %v188 = vld [vmem:[#allocation8 + $0x38] sm:$0xff]
    %v189 = vld [vmem:[#allocation8 + $0x40] sm:$0xff]
    %v190 = vld [vmem:[#allocation8 + $0x48] sm:$0xff]
    %v191 = vld [vmem:[#allocation8 + $0x50] sm:$0xff]
    %v192 = vld [vmem:[#allocation8 + $0x58] sm:$0xff]
    %v193 = vld [vmem:[#allocation8 + $0x60] sm:$0xff]
    %v194 = vld [vmem:[#allocation8 + $0x68] sm:$0xff]
    %v195 = vld [vmem:[#allocation8 + $0x70] sm:$0xff]
    %v196 = vld [vmem:[#allocation8 + $0x78] sm:$0xff]
    %v197 = vld [vmem:[#allocation8 + $0x80] sm:$0xff]
    %v198 = vld [vmem:[#allocation8 + $0x88] sm:$0xff]
    %v199 = vld [vmem:[#allocation8 + $0x90] sm:$0xff]
    %v200 = vld [vmem:[#allocation8 + $0x98] sm:$0xff]
    %v201 = vld [vmem:[#allocation8 + $0xa0] sm:$0xff]
    %v202 = vld [vmem:[#allocation8 + $0xa8] sm:$0xff]
    %v203 = vld [vmem:[#allocation8 + $0xb0] sm:$0xff]
    %v204 = vld [vmem:[#allocation8 + $0xb8] sm:$0xff]
    %v205 = vld [vmem:[#allocation8 + $0xc0] sm:$0xff]
    %v206 = vld [vmem:[#allocation8 + $0xc8] sm:$0xff]
    %v207 = vld [vmem:[#allocation8 + $0xd0] sm:$0xff]
    %v208 = vld [vmem:[#allocation8 + $0xd8] sm:$0xff]
    %v209 = vld [vmem:[#allocation8 + $0xe0] sm:$0xff]
    %v210 = vld [vmem:[#allocation8 + $0xe8] sm:$0xff]
    %v211 = vld [vmem:[#allocation8 + $0xf0] sm:$0xff]
    %v212 = vld [vmem:[#allocation8 + $0xf8] sm:$0xff]
    %v213 = vld [vmem:[#allocation8 + $0x100] sm:$0xff]
    %v214 = vld [vmem:[#allocation8 + $0x108] sm:$0xff]
    %v215 = vld [vmem:[#allocation8 + $0x110] sm:$0xff]
    %v216 = vld [vmem:[#allocation8 + $0x118] sm:$0xff]
    %v217 = vld [vmem:[#allocation8 + $0x120] sm:$0xff]
    %v218 = vld [vmem:[#allocation8 + $0x128] sm:$0xff]
    %v219 = vld [vmem:[#allocation8 + $0x130] sm:$0xff]
    %v220 = vld [vmem:[#allocation8 + $0x138] sm:$0xff]
    %v221 = vld [vmem:[#allocation8 + $0x140] sm:$0xff]
    %v222 = vld [vmem:[#allocation8 + $0x148] sm:$0xff]
    %v223 = vld [vmem:[#allocation8 + $0x150] sm:$0xff]
    %v224 = vld [vmem:[#allocation8 + $0x158] sm:$0xff]
    %v225 = vld [vmem:[#allocation8 + $0x160] sm:$0xff]
    %v226 = vld [vmem:[#allocation8 + $0x168] sm:$0xff]
    %v227 = vld [vmem:[#allocation8 + $0x170] sm:$0xff]
    %v228 = vld [vmem:[#allocation8 + $0x178] sm:$0xff]
    %v229 = vld [vmem:[#allocation8 + $0x180] sm:$0xff]
    %v230 = vld [vmem:[#allocation8 + $0x188] sm:$0xff]
    %v231 = vld [vmem:[#allocation8 + $0x190] sm:$0xff]
    %v232 = vld [vmem:[#allocation8 + $0x198] sm:$0xff]
    %v233 = vld [vmem:[#allocation8 + $0x1a0] sm:$0xff]
    %v234 = vld [vmem:[#allocation8 + $0x1a8] sm:$0xff]
    %v235 = vld [vmem:[#allocation8 + $0x1b0] sm:$0xff]
    %v236 = vld [vmem:[#allocation8 + $0x1b8] sm:$0xff]
    %v237 = vld [vmem:[#allocation8 + $0x1c0] sm:$0xff]
    %v238 = vld [vmem:[#allocation8 + $0x1c8] sm:$0xff]
    %v239 = vld [vmem:[#allocation8 + $0x1d0] sm:$0xff]
    %v240 = vld [vmem:[#allocation8 + $0x1d8] sm:$0xff]
    %v241 = vld [vmem:[#allocation8 + $0x1e0] sm:$0xff]
    %v242 = vld [vmem:[#allocation8 + $0x1e8] sm:$0xff]
    %v243 = vld [vmem:[#allocation8 + $0x1f0] sm:$0xff]
    %v244 = vld [vmem:[#allocation8 + $0x1f8] sm:$0xff]
    %v245 = vld [vmem:[%s4] sm:$0x1]
    %v247 = vperm.slane %v245, 0
    %249 = vmatpush.msra.mxu0 %v196
    %250 = vmatpush.msra.mxu0 %v195
    %251 = vmatpush.msra.mxu0 %v194
    %252 = vmatpush.msra.mxu0 %v193
    %253 = vmatpush.msra.mxu0 %v192
    %254 = vmatpush.msra.mxu0 %v191
    %255 = vmatpush.msra.mxu0 %v190
    %256 = vmatpush.msra.mxu0 %v189
    %257 = vmatpush.msra.mxu0 %v188
    %258 = vmatpush.msra.mxu0 %v187
    %259 = vmatpush.msra.mxu0 %v186
    %260 = vmatpush.msra.mxu0 %v185
    %261 = vmatpush.msra.mxu0 %v184
    %262 = vmatpush.msra.mxu0 %v183
    %263 = vmatpush.msra.mxu0 %v182
    %264 = vmatpush.msra.mxu0 %v181
    %265 = vmatmul.f32.gmra.mxu0 %v177
    %v266 = vpop.f32.mrf.mxu0
    %v267 = vadd.f32 %v247, %v266
    %268 = vdwg.mxu0
    %269 = vmatpush.msra.mxu0 %v212
    %270 = vmatpush.msra.mxu0 %v211
    %271 = vmatpush.msra.mxu0 %v210
    %272 = vmatpush.msra.mxu0 %v209
    %273 = vmatpush.msra.mxu0 %v208
    %274 = vmatpush.msra.mxu0 %v207
    %275 = vmatpush.msra.mxu0 %v206
    %276 = vmatpush.msra.mxu0 %v205
    %277 = vmatpush.msra.mxu0 %v204
    %278 = vmatpush.msra.mxu0 %v203
    %279 = vmatpush.msra.mxu0 %v202
    %280 = vmatpush.msra.mxu0 %v201
    %281 = vmatpush.msra.mxu0 %v200
    %282 = vmatpush.msra.mxu0 %v199
    %283 = vmatpush.msra.mxu0 %v198
    %284 = vmatpush.msra.mxu0 %v197
    %285 = vmatmul.f32.gmra.mxu0 %v178
    %v286 = vpop.f32.mrf.mxu0
    %v287 = vadd.f32 %v267, %v286
    %288 = vdwg.mxu0
    %289 = vmatpush.msra.mxu0 %v228
    %290 = vmatpush.msra.mxu0 %v227
    %291 = vmatpush.msra.mxu0 %v226
    %292 = vmatpush.msra.mxu0 %v225
    %293 = vmatpush.msra.mxu0 %v224
    %294 = vmatpush.msra.mxu0 %v223
    %295 = vmatpush.msra.mxu0 %v222
    %296 = vmatpush.msra.mxu0 %v221
    %297 = vmatpush.msra.mxu0 %v220
    %298 = vmatpush.msra.mxu0 %v219
    %299 = vmatpush.msra.mxu0 %v218
    %300 = vmatpush.msra.mxu0 %v217
    %301 = vmatpush.msra.mxu0 %v216
    %302 = vmatpush.msra.mxu0 %v215
    %303 = vmatpush.msra.mxu0 %v214
    %304 = vmatpush.msra.mxu0 %v213
    %305 = vmatmul.f32.gmra.mxu0 %v179
    %v306 = vpop.f32.mrf.mxu0
    %v307 = vadd.f32 %v287, %v306
    %308 = vdwg.mxu0
    %309 = vmatpush.msra.mxu0 %v244
    %310 = vmatpush.msra.mxu0 %v243
    %311 = vmatpush.msra.mxu0 %v242
    %312 = vmatpush.msra.mxu0 %v241
    %313 = vmatpush.msra.mxu0 %v240
    %314 = vmatpush.msra.mxu0 %v239
    %315 = vmatpush.msra.mxu0 %v238
    %316 = vmatpush.msra.mxu0 %v237
    %317 = vmatpush.msra.mxu0 %v236
    %318 = vmatpush.msra.mxu0 %v235
    %319 = vmatpush.msra.mxu0 %v234
    %320 = vmatpush.msra.mxu0 %v233
    %321 = vmatpush.msra.mxu0 %v232
    %322 = vmatpush.msra.mxu0 %v231
    %323 = vmatpush.msra.mxu0 %v230
    %324 = vmatpush.msra.mxu0 %v229
    %325 = vmatmul.f32.gmra.mxu0 %v180
    %v326 = vpop.f32.mrf.mxu0
    %v327 = vadd.f32 %v307, %v326
    %328 = vdwg.mxu0
    %329 = vst [vmem:[#allocation10] sm:$0xff] %v327
    // Predicated region
    $region38: #{tpu_custom_call.1} parent=1 // pred_check
      _
    $region39: #{tpu_custom_call.1} parent=1 // pred_check_branch
      %331 = sbr.rel (0) target = $region41
    $region40: #{tpu_custom_call.1} parent=1 // pred_region
      %333 = vsyncadd [#allocation4], 0
      %s335 = sshll.u32 [#allocation10], 4
      %s336 = int_to_ptr.vmem [resolvable:$true] %s335
      %s337 = sshll.u32 %s5, 4
      %s338 = int_to_ptr.hbm [resolvable:$true] %s337
      %340 = dma.vmem_to_hbm [thread:$0]  %s336, 128, %s338, [#allocation4]
    $region41: #{tpu_custom_call.1} parent=1 // pred_fallthru
      _
    // Predicated region
    $region42: #{tpu_custom_call.1} parent=1 // pred_check
      _
    $region43: #{tpu_custom_call.1} parent=1 // pred_check_branch
      %342 = sbr.rel (0) target = $region45
    $region44: #{tpu_custom_call.1} parent=1 // pred_region
      %344 = dma.done [#allocation4], 128
    $region45: #{tpu_custom_call.1} parent=1 // pred_fallthru
      _
    %345 = vsyncpa [#allocation3], 1
    %346 = vsyncpa [#allocation6], 1
    %347 = vsyncpa [#allocation9], 1
    %348 = vsyncpa [#allocation4], 1

</llo_original>
